<compile_context>
chip_gen: v6e
topology: v6e:2x2x1
jax: 0.10.0
libtpu: 0.0.40
codegen_flags: <defaults>
</compile_context>

<pallas_src>
import functools

import jax
import jax.numpy as jnp
from jax.experimental import pallas as pl
from jax.experimental.pallas import tpu as pltpu


# ----------------------------------------------------------------------------
# Activation helpers (f32, applied in the epilogue of each layer)
# ----------------------------------------------------------------------------
def _apply_activation(y, name):
    if name is None:
        return y
    if name == "relu":
        return jnp.maximum(y, 0.0)
    if name == "sigmoid":
        return jax.nn.sigmoid(y)
    if name == "tanh":
        return jnp.tanh(y)
    if name == "softplus":
        # numerically-stable softplus (matches F.softplus threshold behaviour)
        return jnp.where(y > 20.0, y, jnp.log1p(jnp.exp(jnp.minimum(y, 20.0))))
    raise ValueError(f"unknown activation: {name}")


# ----------------------------------------------------------------------------
# Fused MLP kernel: all layers for one row tile of the batch
# ----------------------------------------------------------------------------
def _mlp_kernel(*refs, num_layers, activation, output_activation, compute_dtype):
    x_ref = refs[0]
    o_ref = refs[-1]
    h = x_ref[...]                                   # (tm, D0) in compute_dtype
    for li in range(num_layers):
        w = refs[1 + 2 * li][...]                    # (K, N) compute_dtype
        b = refs[2 + 2 * li][...]                    # (1, N) f32
        y = jnp.dot(h.astype(w.dtype), w, preferred_element_type=jnp.float32)
        y = y + b
        is_last = li == num_layers - 1
        if is_last and output_activation is not None:
            y = _apply_activation(y, output_activation)
        else:
            y = _apply_activation(y, activation)
        h = y                                        # f32 between layers
    o_ref[...] = h.astype(o_ref.dtype)


def _round_up(v, m):
    return ((v + m - 1) // m) * m


def perceptron_forward(x, weights, biases, *, activation="relu",
                       output_activation=None, compute_dtype=jnp.bfloat16):
    """Fused Perceptron forward.

    x       : (B, dims[0]) f32
    weights : list of (dims[i], dims[i+1]) arrays (torch weight transposed)
    biases  : list of (dims[i+1],) arrays
    """
    assert len(weights) == len(biases) and len(weights) >= 1
    B, D0 = x.shape
    num_layers = len(weights)
    out_dim = weights[-1].shape[1]

    # Row tile over the batch; pad once for the whole fused network.
    tm = min(256, _round_up(B, 8))
    pB = _round_up(B, tm)
    if pB != B:
        x = jnp.pad(x, ((0, pB - B), (0, 0)))

    args = [x.astype(compute_dtype)]
    in_specs = [pl.BlockSpec((tm, D0), lambda i: (i, 0))]
    for w, b in zip(weights, biases):
        K, N = w.shape
        args.append(w.astype(compute_dtype))
        args.append(b.reshape(1, N).astype(jnp.float32))
        in_specs.append(pl.BlockSpec((K, N), lambda i: (0, 0)))
        in_specs.append(pl.BlockSpec((1, N), lambda i: (0, 0)))

    out = pl.pallas_call(
        functools.partial(
            _mlp_kernel,
            num_layers=num_layers,
            activation=activation,
            output_activation=output_activation,
            compute_dtype=compute_dtype,
        ),
        out_shape=jax.ShapeDtypeStruct((pB, out_dim), jnp.float32),
        grid_spec=pltpu.PrefetchScalarGridSpec(
            num_scalar_prefetch=0,
            grid=(pB // tm,),
            in_specs=in_specs,
            out_specs=pl.BlockSpec((tm, out_dim), lambda i: (i, 0)),
        ),
        compiler_params=pltpu.CompilerParams(
            dimension_semantics=("parallel",)),
    )(*args)
    return out[:B]


# ----------------------------------------------------------------------------
# Reference (pure JAX, f32) for a sanity check
# ----------------------------------------------------------------------------
def perceptron_reference(x, weights, biases, *, activation="relu",
                         output_activation=None):
    h = x.astype(jnp.float32)
    n = len(weights)
    for i, (w, b) in enumerate(zip(weights, biases)):
        h = h @ w.astype(jnp.float32) + b.astype(jnp.float32)
        if i == n - 1 and output_activation is not None:
            h = _apply_activation(h, output_activation)
        else:
            h = _apply_activation(h, activation)
    return h


# ----------------------------------------------------------------------------
# Parameter init (weights stored as (in, out) == torch Linear weight.T)
# ----------------------------------------------------------------------------
def init_params(key, dims):
    weights, biases = [], []
    for din, dout in zip(dims, dims[1:]):
        key, kw, kb = jax.random.split(key, 3)
        weights.append(jax.random.normal(kw, (din, dout), jnp.float32)
                       / jnp.sqrt(float(din)))
        biases.append(jax.random.normal(kb, (dout,), jnp.float32) * 0.01)
    return weights, biases


if __name__ == "__main__":
    B = 2
    DIMS = [32, 64, 64, 16]

    key = jax.random.PRNGKey(0)
    kp, kx = jax.random.split(key, 2)
    weights, biases = init_params(kp, DIMS)
    x = jax.random.normal(kx, (B, DIMS[0]), jnp.float32)

    # Default torch ctor semantics: activation_fn=F.relu, output_activation=None
    # -> ReLU is applied after every layer, including the last.
    y_default = perceptron_forward(x, weights, biases,
                                   activation="relu", output_activation=None)
    # Also exercise the output_activation branch.
    y_sigmoid = perceptron_forward(x, weights, biases,
                                   activation="relu", output_activation="sigmoid")
    jax.block_until_ready((y_default, y_sigmoid))

    assert y_default.shape == (B, DIMS[-1])
    assert y_sigmoid.shape == (B, DIMS[-1])

    # Loose numerical sanity check vs f32 reference (bf16 matmul operands).
    ref_default = perceptron_reference(x, weights, biases,
                                       activation="relu", output_activation=None)
    ref_sigmoid = perceptron_reference(x, weights, biases,
                                       activation="relu", output_activation="sigmoid")
    assert bool(jnp.all(jnp.isfinite(y_default))) and bool(jnp.all(jnp.isfinite(y_sigmoid)))
    assert bool(jnp.allclose(y_default, ref_default, atol=1e-1, rtol=1e-1))
    assert bool(jnp.allclose(y_sigmoid, ref_sigmoid, atol=1e-1, rtol=1e-1))

    print("KERNEL_OK")
</pallas_src>

<mosaic_0001>
module attributes {stable_mosaic.version = 11 : i64} {
  func.func @_mlp_kernel(%arg0: i32, %arg1: memref<8x32xbf16, #tpu.memory_space<vmem>>, %arg2: memref<32x64xbf16, #tpu.memory_space<vmem>>, %arg3: memref<1x64xf32, #tpu.memory_space<vmem>>, %arg4: memref<64x64xbf16, #tpu.memory_space<vmem>>, %arg5: memref<1x64xf32, #tpu.memory_space<vmem>>, %arg6: memref<64x16xbf16, #tpu.memory_space<vmem>>, %arg7: memref<1x16xf32, #tpu.memory_space<vmem>>, %arg8: memref<8x16xf32, #tpu.memory_space<vmem>>) attributes {dimension_semantics = [#tpu.dimension_semantics<parallel>], iteration_bounds = array<i64: 1>, scalar_prefetch = 0 : i64, scratch_operands = 0 : i64, tpu.core_type = #tpu.core_type<tc>, window_params = [{transform_indices = @transform_0, window_bounds = array<i64: 8, 32>}, {pipeline_mode = #tpu.pipeline_mode<synchronous>, transform_indices = @transform_1, window_bounds = array<i64: 32, 64>}, {pipeline_mode = #tpu.pipeline_mode<synchronous>, transform_indices = @transform_2, window_bounds = array<i64: 1, 64>}, {pipeline_mode = #tpu.pipeline_mode<synchronous>, transform_indices = @transform_3, window_bounds = array<i64: 64, 64>}, {pipeline_mode = #tpu.pipeline_mode<synchronous>, transform_indices = @transform_4, window_bounds = array<i64: 1, 64>}, {pipeline_mode = #tpu.pipeline_mode<synchronous>, transform_indices = @transform_5, window_bounds = array<i64: 64, 16>}, {pipeline_mode = #tpu.pipeline_mode<synchronous>, transform_indices = @transform_6, window_bounds = array<i64: 1, 16>}, {transform_indices = @transform_7, window_bounds = array<i64: 8, 16>}]} {
    %c0 = arith.constant 0 : index
    %c0_0 = arith.constant 0 : index
    %0 = vector.load %arg1[%c0, %c0_0] : memref<8x32xbf16, #tpu.memory_space<vmem>>, vector<8x32xbf16>
    %c0_1 = arith.constant 0 : index
    %c0_2 = arith.constant 0 : index
    %1 = vector.load %arg2[%c0_1, %c0_2] : memref<32x64xbf16, #tpu.memory_space<vmem>>, vector<32x64xbf16>
    %c0_3 = arith.constant 0 : index
    %c0_4 = arith.constant 0 : index
    %2 = vector.load %arg3[%c0_3, %c0_4] : memref<1x64xf32, #tpu.memory_space<vmem>>, vector<1x64xf32>
    %cst = arith.constant dense<0.000000e+00> : vector<8x64xf32>
    %3 = tpu.matmul %0, %1, %cst {dimension_numbers = #tpu.dot_dimension_numbers<[1], [0], [0], [1], [0, 0, 1, 1], [], []>} : vector<8x32xbf16>, vector<32x64xbf16>, vector<8x64xf32> -> vector<8x64xf32>
    %4 = vector.broadcast %2 : vector<1x64xf32> to vector<8x64xf32>
    %5 = arith.addf %3, %4 : vector<8x64xf32>
    %cst_5 = arith.constant 0.000000e+00 : f32
    %6 = vector.broadcast %cst_5 : f32 to vector<8x64xf32>
    %7 = arith.maximumf %5, %6 : vector<8x64xf32>
    %c0_6 = arith.constant 0 : index
    %c0_7 = arith.constant 0 : index
    %8 = vector.load %arg4[%c0_6, %c0_7] : memref<64x64xbf16, #tpu.memory_space<vmem>>, vector<64x64xbf16>
    %c0_8 = arith.constant 0 : index
    %c0_9 = arith.constant 0 : index
    %9 = vector.load %arg5[%c0_8, %c0_9] : memref<1x64xf32, #tpu.memory_space<vmem>>, vector<1x64xf32>
    %10 = arith.truncf %7 : vector<8x64xf32> to vector<8x64xbf16>
    %cst_10 = arith.constant dense<0.000000e+00> : vector<8x64xf32>
    %11 = tpu.matmul %10, %8, %cst_10 {dimension_numbers = #tpu.dot_dimension_numbers<[1], [0], [0], [1], [0, 0, 1, 1], [], []>} : vector<8x64xbf16>, vector<64x64xbf16>, vector<8x64xf32> -> vector<8x64xf32>
    %12 = vector.broadcast %9 : vector<1x64xf32> to vector<8x64xf32>
    %13 = arith.addf %11, %12 : vector<8x64xf32>
    %cst_11 = arith.constant 0.000000e+00 : f32
    %14 = vector.broadcast %cst_11 : f32 to vector<8x64xf32>
    %15 = arith.maximumf %13, %14 : vector<8x64xf32>
    %c0_12 = arith.constant 0 : index
    %c0_13 = arith.constant 0 : index
    %16 = vector.load %arg6[%c0_12, %c0_13] : memref<64x16xbf16, #tpu.memory_space<vmem>>, vector<64x16xbf16>
    %c0_14 = arith.constant 0 : index
    %c0_15 = arith.constant 0 : index
    %17 = vector.load %arg7[%c0_14, %c0_15] : memref<1x16xf32, #tpu.memory_space<vmem>>, vector<1x16xf32>
    %18 = arith.truncf %15 : vector<8x64xf32> to vector<8x64xbf16>
    %cst_16 = arith.constant dense<0.000000e+00> : vector<8x16xf32>
    %19 = tpu.matmul %18, %16, %cst_16 {dimension_numbers = #tpu.dot_dimension_numbers<[1], [0], [0], [1], [0, 0, 1, 1], [], []>} : vector<8x64xbf16>, vector<64x16xbf16>, vector<8x16xf32> -> vector<8x16xf32>
    %20 = vector.broadcast %17 : vector<1x16xf32> to vector<8x16xf32>
    %21 = arith.addf %19, %20 : vector<8x16xf32>
    %cst_17 = arith.constant 0.000000e+00 : f32
    %22 = vector.broadcast %cst_17 : f32 to vector<8x16xf32>
    %23 = arith.maximumf %21, %22 : vector<8x16xf32>
    %c0_18 = arith.constant 0 : index
    %c0_19 = arith.constant 0 : index
    %24 = vector.load %arg8[%c0_18, %c0_19] : memref<8x16xf32, #tpu.memory_space<vmem>>, vector<8x16xf32>
    tpu.vector_store %arg8[%c0_18, %c0_19], %23 {strides = array<i32>} : memref<8x16xf32, #tpu.memory_space<vmem>>, vector<8x16xf32>,
    return
  }
  func.func @transform_0(%arg0: i32) -> (i32, i32) {
    %c0_i32 = arith.constant 0 : i32
    %c0_i32_0 = arith.constant 0 : i32
    return %arg0, %c0_i32 : i32, i32
  }
  func.func @transform_1(%arg0: i32) -> (i32, i32) {
    %c0_i32 = arith.constant 0 : i32
    %c0_i32_0 = arith.constant 0 : i32
    %c0_i32_1 = arith.constant 0 : i32
    return %c0_i32, %c0_i32_0 : i32, i32
  }
  func.func @transform_2(%arg0: i32) -> (i32, i32) {
    %c0_i32 = arith.constant 0 : i32
    %c0_i32_0 = arith.constant 0 : i32
    %c0_i32_1 = arith.constant 0 : i32
    return %c0_i32, %c0_i32_0 : i32, i32
  }
  func.func @transform_3(%arg0: i32) -> (i32, i32) {
    %c0_i32 = arith.constant 0 : i32
    %c0_i32_0 = arith.constant 0 : i32
    %c0_i32_1 = arith.constant 0 : i32
    return %c0_i32, %c0_i32_0 : i32, i32
  }
  func.func @transform_4(%arg0: i32) -> (i32, i32) {
    %c0_i32 = arith.constant 0 : i32
    %c0_i32_0 = arith.constant 0 : i32
    %c0_i32_1 = arith.constant 0 : i32
    return %c0_i32, %c0_i32_0 : i32, i32
  }
  func.func @transform_5(%arg0: i32) -> (i32, i32) {
    %c0_i32 = arith.constant 0 : i32
    %c0_i32_0 = arith.constant 0 : i32
    %c0_i32_1 = arith.constant 0 : i32
    return %c0_i32, %c0_i32_0 : i32, i32
  }
  func.func @transform_6(%arg0: i32) -> (i32, i32) {
    %c0_i32 = arith.constant 0 : i32
    %c0_i32_0 = arith.constant 0 : i32
    %c0_i32_1 = arith.constant 0 : i32
    return %c0_i32, %c0_i32_0 : i32, i32
  }
  func.func @transform_7(%arg0: i32) -> (i32, i32) {
    %c0_i32 = arith.constant 0 : i32
    %c0_i32_0 = arith.constant 0 : i32
    return %arg0, %c0_i32 : i32, i32
  }
}

</mosaic_0001>

<llo_original>
// kernel: tpu_custom_call.1
$region0: #{tpu_custom_call.1}
  #allocation0 [shape = 'u32[]', space=smem, size = 0x4, offset = 0x4, fixed_abs, tag = 'smem constant byte address 0x4 - core index']
  #allocation1 [shape = 'u32[144,128]{1,0:T(1,128)}', space=vmem, size = 0x12000, scoped, tag = 'internal scratch']
  %s0 = inlined_call_operand.vmem [shape: bf16[8,32], index: 0, kind: input, shape index: {}]
  %s1 = inlined_call_operand.hbm [shape: bf16[32,64], index: 1, kind: input, shape index: {}]
  %s2 = inlined_call_operand.vmem [shape: f32[1,64], index: 2, kind: input, shape index: {}]
  %s3 = inlined_call_operand.vmem [shape: bf16[64,64], index: 3, kind: input, shape index: {}]
  %s4 = inlined_call_operand.vmem [shape: f32[1,64], index: 4, kind: input, shape index: {}]
  %s5 = inlined_call_operand.vmem [shape: bf16[64,16], index: 5, kind: input, shape index: {}]
  %s6 = inlined_call_operand.vmem [shape: f32[1,16], index: 6, kind: input, shape index: {}]
  %s7 = inlined_call_operand.hbm [shape: f32[8,16], index: 7, kind: output, shape index: {}]
  %s8 = sld [smem:[#allocation0]]
  $region42: #{tpu_custom_call.1} parent=0
    _
  %s10 = ssub.s32 1, %s8
  %s11 = scalar_select 0, %s10, %s8
  $region1: #{tpu_custom_call.1} parent=0
    #allocation2 [shape = 'u8[8192]{0}', space=vmem, size = 0x2000, scoped, tag = 'input window, operand 1, single buffered']
    #allocation3 [shape = 's32[1]{0}', space=sflag, size = 0x4, scoped, tag = 'scoped memory for tpu_custom_call.1']
    #allocation4 [shape = 's32[1]{0}', space=sflag, size = 0x4, scoped, tag = 'scoped memory for tpu_custom_call.1']
    #allocation5 [shape = 'u8[4096]{0}', space=vmem, size = 0x1000, scoped, tag = 'output window, operand 0, single buffered']
    %12 = vsyncpa [#allocation3], 0
    %13 = vsyncpa [#allocation4], 0
    // Predicated region
    $region2: #{tpu_custom_call.1} parent=1 // pred_check
      _
    $region3: #{tpu_custom_call.1} parent=1 // pred_check_branch
      %15 = sbr.rel (0) target = $region5
    $region4: #{tpu_custom_call.1} parent=1 // pred_region
      _
    $region5: #{tpu_custom_call.1} parent=1 // pred_fallthru
      _
    // Predicated region
    $region6: #{tpu_custom_call.1} parent=1 // pred_check
      _
    $region7: #{tpu_custom_call.1} parent=1 // pred_check_branch
      %17 = sbr.rel (0) target = $region9
    $region8: #{tpu_custom_call.1} parent=1 // pred_region
      %s19 = ssub.s32 256, 256
      %20 = vsyncadd [#allocation3], %s19
      %s21 = sshll.u32 [#allocation2], 4
      %s22 = int_to_ptr.vmem [resolvable:$true] %s21
      %27 = dma.hbm_to_vmem [thread:$0]  %s1, 256, %s22, [#allocation3], 64, 64, 4
    $region9: #{tpu_custom_call.1} parent=1 // pred_fallthru
      _
    // Predicated region
    $region10: #{tpu_custom_call.1} parent=1 // pred_check
      _
    $region11: #{tpu_custom_call.1} parent=1 // pred_check_branch
      %29 = sbr.rel (0) target = $region13
    $region12: #{tpu_custom_call.1} parent=1 // pred_region
      _
    $region13: #{tpu_custom_call.1} parent=1 // pred_fallthru
      _
    // Predicated region
    $region14: #{tpu_custom_call.1} parent=1 // pred_check
      _
    $region15: #{tpu_custom_call.1} parent=1 // pred_check_branch
      %31 = sbr.rel (0) target = $region17
    $region16: #{tpu_custom_call.1} parent=1 // pred_region
      _
    $region17: #{tpu_custom_call.1} parent=1 // pred_fallthru
      _
    // Predicated region
    $region18: #{tpu_custom_call.1} parent=1 // pred_check
      _
    $region19: #{tpu_custom_call.1} parent=1 // pred_check_branch
      %33 = sbr.rel (0) target = $region21
    $region20: #{tpu_custom_call.1} parent=1 // pred_region
      _
    $region21: #{tpu_custom_call.1} parent=1 // pred_fallthru
      _
    // Predicated region
    $region22: #{tpu_custom_call.1} parent=1 // pred_check
      _
    $region23: #{tpu_custom_call.1} parent=1 // pred_check_branch
      %35 = sbr.rel (0) target = $region25
    $region24: #{tpu_custom_call.1} parent=1 // pred_region
      _
    $region25: #{tpu_custom_call.1} parent=1 // pred_fallthru
      _
    // Predicated region
    $region26: #{tpu_custom_call.1} parent=1 // pred_check
      _
    $region27: #{tpu_custom_call.1} parent=1 // pred_check_branch
      %37 = sbr.rel (0) target = $region29
    $region28: #{tpu_custom_call.1} parent=1 // pred_region
      _
    $region29: #{tpu_custom_call.1} parent=1 // pred_fallthru
      _
    // Predicated region
    $region30: #{tpu_custom_call.1} parent=1 // pred_check
      _
    $region31: #{tpu_custom_call.1} parent=1 // pred_check_branch
      %39 = sbr.rel (0) target = $region33
    $region32: #{tpu_custom_call.1} parent=1 // pred_region
      %40 = dma.done [#allocation3], 256
    $region33: #{tpu_custom_call.1} parent=1 // pred_fallthru
      _
    %v42 = vld [vmem:[%s0] sm:$0xf]
    %v43 = vld [vmem:[#allocation2] sm:$0xf]
    %v44 = vld [vmem:[#allocation2 + $0x4] sm:$0xf]
    %v45 = vld [vmem:[#allocation2 + $0x8] sm:$0xf]
    %v46 = vld [vmem:[#allocation2 + $0xc] sm:$0xf]
    %v47 = vld [vmem:[%s2] sm:$0x1]
    %v49 = vlaneseq
    %v50 = vshrl.u32 %v49, 7
    %v51 = vsub.s32 0, %v50
    %v52 = vrot.slane %v47, %v51
    %v58 = vunpack.c.l.b16 %v43
    %v59 = vunpack.c.l.b16 %v44
    %v60 = vunpack.c.l.b16 %v45
    %v61 = vunpack.c.l.b16 %v46
    %v62 = vpack.c.b16 %v59, %v58
    %v63 = vpack.c.b16 %v61, %v60
    %vm66 = vcmask 261120
    %v68 = vsel %vm66, %v42, 0
    %70 = vmatprep.subr.bf16.mxu0 0
    %71 = vmatpush1.bf16.msra.mxu0 0
    %72 = vmatprep.subr.bf16.mxu0 0
    %73 = vmatpush1.bf16.msra.mxu0 0
    %74 = vmatprep.subr.bf16.mxu0 0
    %75 = vmatpush1.bf16.msra.mxu0 0
    %76 = vmatprep.subr.bf16.mxu0 0
    %77 = vmatpush1.bf16.msra.mxu0 0
    %78 = vmatprep.subr.bf16.mxu0 0
    %79 = vmatpush1.bf16.msra.mxu0 0
    %80 = vmatprep.subr.bf16.mxu0 0
    %81 = vmatpush1.bf16.msra.mxu0 0
    %82 = vmatprep.subr.bf16.mxu0 0
    %83 = vmatpush1.bf16.msra.mxu0 %v63
    %84 = vmatprep.subr.bf16.mxu0 0
    %85 = vmatpush1.bf16.msra.mxu0 %v62
    %86 = vmatprep.subr.bf16.mxu0 0
    %87 = vmatpush2.bf16.msra.mxu0 0
    %88 = vmatprep.subr.bf16.mxu0 0
    %89 = vmatpush2.bf16.msra.mxu0 0
    %90 = vmatprep.subr.bf16.mxu0 0
    %91 = vmatpush2.bf16.msra.mxu0 0
    %92 = vmatprep.subr.bf16.mxu0 0
    %93 = vmatpush2.bf16.msra.mxu0 0
    %94 = vmatprep.subr.bf16.mxu0 0
    %95 = vmatpush2.bf16.msra.mxu0 0
    %96 = vmatprep.subr.bf16.mxu0 0
    %97 = vmatpush2.bf16.msra.mxu0 0
    %98 = vmatprep.subr.bf16.mxu0 0
    %99 = vmatpush2.bf16.msra.mxu0 0
    %100 = vmatprep.subr.bf16.mxu0 0
    %101 = vmatpush2.bf16.msra.mxu0 0
    %102 = vmatprep.mubr.bf16.mxu0 0
    %103 = vmatmul.mubr.bf16.gmra.mxu0 %v68
    %v104 = vpop.f32.mrf.mxu0
    %v105 = vadd.f32 %v52, %v104
    %v106 = vpop.f32.mrf.mxu0
    %v107 = vpop.f32.mrf.mxu0
    %v108 = vpop.f32.mrf.mxu0
    %109 = vdwg.mxu0
    %v110 = vmax.f32 %v105, 0.0
    %v111 = vld [vmem:[%s3] sm:$0xf]
    %v112 = vld [vmem:[%s3 + $0x4] sm:$0xf]
    %v113 = vld [vmem:[%s3 + $0x8] sm:$0xf]
    %v114 = vld [vmem:[%s3 + $0xc] sm:$0xf]
    %v115 = vld [vmem:[%s3 + $0x10] sm:$0xf]
    %v116 = vld [vmem:[%s3 + $0x14] sm:$0xf]
    %v117 = vld [vmem:[%s3 + $0x18] sm:$0xf]
    %v118 = vld [vmem:[%s3 + $0x1c] sm:$0xf]
    %v119 = vld [vmem:[%s4] sm:$0x1]
    %v120 = vpack.c.bf16 %v110, %v110
    %v122 = vlaneseq
    %v123 = vshrl.u32 %v122, 7
    %v124 = vsub.s32 0, %v123
    %v125 = vrot.slane %v119, %v124
    %v135 = vunpack.c.l.b16 %v111
    %v136 = vunpack.c.l.b16 %v112
    %v137 = vunpack.c.l.b16 %v113
    %v138 = vunpack.c.l.b16 %v114
    %v139 = vunpack.c.l.b16 %v115
    %v140 = vunpack.c.l.b16 %v116
    %v141 = vunpack.c.l.b16 %v117
    %v142 = vunpack.c.l.b16 %v118
    %v143 = vpack.c.b16 %v136, %v135
    %v144 = vpack.c.b16 %v138, %v137
    %v145 = vpack.c.b16 %v140, %v139
    %v146 = vpack.c.b16 %v142, %v141
    %vm151 = vcmask 523264
    %v153 = vsel %vm151, %v120, 0
    %155 = vmatprep.subr.bf16.mxu0 0
    %156 = vmatpush1.bf16.msra.mxu0 0
    %157 = vmatprep.subr.bf16.mxu0 0
    %158 = vmatpush1.bf16.msra.mxu0 0
    %159 = vmatprep.subr.bf16.mxu0 0
    %160 = vmatpush1.bf16.msra.mxu0 0
    %161 = vmatprep.subr.bf16.mxu0 0
    %162 = vmatpush1.bf16.msra.mxu0 0
    %163 = vmatprep.subr.bf16.mxu0 0
    %164 = vmatpush1.bf16.msra.mxu0 %v146
    %165 = vmatprep.subr.bf16.mxu0 0
    %166 = vmatpush1.bf16.msra.mxu0 %v145
    %167 = vmatprep.subr.bf16.mxu0 0
    %168 = vmatpush1.bf16.msra.mxu0 %v144
    %169 = vmatprep.subr.bf16.mxu0 0
    %170 = vmatpush1.bf16.msra.mxu0 %v143
    %171 = vmatprep.subr.bf16.mxu0 0
    %172 = vmatpush2.bf16.msra.mxu0 0
    %173 = vmatprep.subr.bf16.mxu0 0
    %174 = vmatpush2.bf16.msra.mxu0 0
    %175 = vmatprep.subr.bf16.mxu0 0
    %176 = vmatpush2.bf16.msra.mxu0 0
    %177 = vmatprep.subr.bf16.mxu0 0
    %178 = vmatpush2.bf16.msra.mxu0 0
    %179 = vmatprep.subr.bf16.mxu0 0
    %180 = vmatpush2.bf16.msra.mxu0 0
    %181 = vmatprep.subr.bf16.mxu0 0
    %182 = vmatpush2.bf16.msra.mxu0 0
    %183 = vmatprep.subr.bf16.mxu0 0
    %184 = vmatpush2.bf16.msra.mxu0 0
    %185 = vmatprep.subr.bf16.mxu0 0
    %186 = vmatpush2.bf16.msra.mxu0 0
    %187 = vmatprep.mubr.bf16.mxu0 0
    %188 = vmatmul.mubr.bf16.gmra.mxu0 %v153
    %v189 = vpop.f32.mrf.mxu0
    %v190 = vadd.f32 %v125, %v189
    %v191 = vpop.f32.mrf.mxu0
    %v192 = vpop.f32.mrf.mxu0
    %v193 = vpop.f32.mrf.mxu0
    %194 = vdwg.mxu0
    %v195 = vmax.f32 %v190, 0.0
    %v196 = vld [vmem:[%s5] sm:$0xf]
    %v197 = vld [vmem:[%s5 + $0x4] sm:$0xf]
    %v198 = vld [vmem:[%s5 + $0x8] sm:$0xf]
    %v199 = vld [vmem:[%s5 + $0xc] sm:$0xf]
    %v200 = vld [vmem:[%s5 + $0x10] sm:$0xf]
    %v201 = vld [vmem:[%s5 + $0x14] sm:$0xf]
    %v202 = vld [vmem:[%s5 + $0x18] sm:$0xf]
    %v203 = vld [vmem:[%s5 + $0x1c] sm:$0xf]
    %v204 = vld [vmem:[%s6] sm:$0x1]
    %v205 = vpack.c.bf16 %v195, %v195
    %v207 = vlaneseq
    %v208 = vshrl.u32 %v207, 7
    %v209 = vsub.s32 0, %v208
    %v210 = vrot.slane %v204, %v209
    %v220 = vunpack.c.l.b16 %v196
    %v221 = vunpack.c.l.b16 %v197
    %v222 = vunpack.c.l.b16 %v198
    %v223 = vunpack.c.l.b16 %v199
    %v224 = vunpack.c.l.b16 %v200
    %v225 = vunpack.c.l.b16 %v201
    %v226 = vunpack.c.l.b16 %v202
    %v227 = vunpack.c.l.b16 %v203
    %v228 = vpack.c.b16 %v221, %v220
    %v229 = vpack.c.b16 %v223, %v222
    %v230 = vpack.c.b16 %v225, %v224
    %v231 = vpack.c.b16 %v227, %v226
    %v237 = vsel %vm151, %v205, 0
    %239 = vmatprep.subr.bf16.mxu0 0
    %240 = vmatpush1.bf16.msra.mxu0 0
    %241 = vmatprep.subr.bf16.mxu0 0
    %242 = vmatpush1.bf16.msra.mxu0 0
    %243 = vmatprep.subr.bf16.mxu0 0
    %244 = vmatpush1.bf16.msra.mxu0 0
    %245 = vmatprep.subr.bf16.mxu0 0
    %246 = vmatpush1.bf16.msra.mxu0 0
    %247 = vmatprep.subr.bf16.mxu0 0
    %248 = vmatpush1.bf16.msra.mxu0 %v231
    %249 = vmatprep.subr.bf16.mxu0 0
    %250 = vmatpush1.bf16.msra.mxu0 %v230
    %251 = vmatprep.subr.bf16.mxu0 0
    %252 = vmatpush1.bf16.msra.mxu0 %v229
    %253 = vmatprep.subr.bf16.mxu0 0
    %254 = vmatpush1.bf16.msra.mxu0 %v228
    %255 = vmatprep.subr.bf16.mxu0 0
    %256 = vmatpush2.bf16.msra.mxu0 0
    %257 = vmatprep.subr.bf16.mxu0 0
    %258 = vmatpush2.bf16.msra.mxu0 0
    %259 = vmatprep.subr.bf16.mxu0 0
    %260 = vmatpush2.bf16.msra.mxu0 0
    %261 = vmatprep.subr.bf16.mxu0 0
    %262 = vmatpush2.bf16.msra.mxu0 0
    %263 = vmatprep.subr.bf16.mxu0 0
    %264 = vmatpush2.bf16.msra.mxu0 0
    %265 = vmatprep.subr.bf16.mxu0 0
    %266 = vmatpush2.bf16.msra.mxu0 0
    %267 = vmatprep.subr.bf16.mxu0 0
    %268 = vmatpush2.bf16.msra.mxu0 0
    %269 = vmatprep.subr.bf16.mxu0 0
    %270 = vmatpush2.bf16.msra.mxu0 0
    %271 = vmatprep.mubr.bf16.mxu0 0
    %272 = vmatmul.mubr.bf16.gmra.mxu0 %v237
    %v273 = vpop.f32.mrf.mxu0
    %v274 = vadd.f32 %v210, %v273
    %v275 = vpop.f32.mrf.mxu0
    %v276 = vpop.f32.mrf.mxu0
    %v277 = vpop.f32.mrf.mxu0
    %278 = vdwg.mxu0
    %v279 = vmax.f32 %v274, 0.0
    %vm280 = vcmask 130048
    %281 = vst.msk [vmem:[#allocation5] sm:$0xff] %vm280, %v279
    // Predicated region
    $region34: #{tpu_custom_call.1} parent=1 // pred_check
      _
    $region35: #{tpu_custom_call.1} parent=1 // pred_check_branch
      %283 = sbr.rel (0) target = $region37
    $region36: #{tpu_custom_call.1} parent=1 // pred_region
      %s285 = ssub.s32 128, 128
      %286 = vsyncadd [#allocation4], %s285
      %s288 = sshll.u32 [#allocation5], 4
      %s289 = int_to_ptr.vmem [resolvable:$true] %s288
      %291 = dma.vmem_to_hbm [thread:$0]  %s289, 128, %s7, [#allocation4]
    $region37: #{tpu_custom_call.1} parent=1 // pred_fallthru
      _
    // Predicated region
    $region38: #{tpu_custom_call.1} parent=1 // pred_check
      _
    $region39: #{tpu_custom_call.1} parent=1 // pred_check_branch
      %293 = sbr.rel (0) target = $region41
    $region40: #{tpu_custom_call.1} parent=1 // pred_region
      %294 = dma.done [#allocation4], 128
    $region41: #{tpu_custom_call.1} parent=1 // pred_fallthru
      _
    %295 = vsyncpa [#allocation3], 1
    %296 = vsyncpa [#allocation4], 1

</llo_original>
